<compile_context>
chip_gen: v6e
topology: v6e:2x2x1
jax: 0.10.0
libtpu: 0.0.40
codegen_flags: <defaults>
</compile_context>

<pallas_src>
import jax
import jax.numpy as jnp
from jax.experimental import pallas as pl
from jax.experimental.pallas import tpu as pltpu


def _copy_kernel(x_ref, o_ref):
    # Lane-dense identity copy of one (tr, cols) tile.
    o_ref[...] = x_ref[...]


def _sublane_multiple(dtype) -> int:
    """Sublane packing multiple: 8 for 4-byte, 16 for 2-byte, 32 for 1-byte dtypes."""
    return max(8, 32 // jnp.dtype(dtype).itemsize)


def _per_buffer_budget_bytes() -> int:
    """Per pipeline-buffer byte budget.

    The pipeline holds 2 input + 2 output buffers; keep their sum under the
    smallest default scoped-VMEM limit across generations (16 MiB on v5e),
    further capped by a quarter of the queried physical VMEM (64 MiB on v7x).
    """
    scoped = 16 * 1024 * 1024
    try:
        scoped = min(scoped, pltpu.get_tpu_info().vmem_capacity_bytes // 4)
    except Exception:
        pass
    return scoped // 5  # 4 buffers + headroom


def _lane_dense_view(total_elems: int):
    """Pick a (rows, cols) re-view whose last dim is a multiple of 128 lanes."""
    if total_elems % 128 != 0:
        return None
    for cols in (2048, 1024, 512, 256, 128):
        if total_elems % cols == 0:
            return total_elems // cols, cols
    return None


def _pick_row_tile(rows: int, cols: int, itemsize: int, sublane: int) -> int:
    """Rows per block: sublane-multiple, multi-MiB block, VMEM-budget capped."""
    target = _per_buffer_budget_bytes() // max(1, cols * itemsize)
    target = max(sublane, (target // sublane) * sublane)
    if rows <= target:
        return rows  # full-extent batch block: always legal w.r.t. (8,128) rule
    return min(target, (rows // sublane) * sublane)


def _identity_copy_2d(x2: jax.Array) -> jax.Array:
    """Pipelined HBM->HBM identity copy of a 2-D slab, tiled over rows."""
    rows, cols = x2.shape
    itemsize = jnp.dtype(x2.dtype).itemsize
    tr = _pick_row_tile(rows, cols, itemsize, _sublane_multiple(x2.dtype))
    return pl.pallas_call(
        _copy_kernel,
        out_shape=jax.ShapeDtypeStruct((rows, cols), x2.dtype),
        grid=(pl.cdiv(rows, tr),),
        in_specs=[pl.BlockSpec((tr, cols), lambda i: (i, 0))],
        out_specs=pl.BlockSpec((tr, cols), lambda i: (i, 0)),
        input_output_aliases={0: 0},
        compiler_params=pltpu.CompilerParams(
            dimension_semantics=("parallel",)),
        cost_estimate=pl.CostEstimate(
            flops=0,
            transcendentals=0,
            bytes_accessed=2 * rows * cols * itemsize),
    )(x2)


def unflatten(x: jax.Array, filters: int = 1, size: int = 28) -> jax.Array:
    """Pallas equivalent of UnFlatten(filters, size).forward(x).

    NOTE: the input HBM buffer is aliased into the output
    (input_output_aliases={0: 0}); callers must not reuse `x` afterwards.
    """
    b = x.shape[0]
    flat = filters * size * size
    assert x.shape == (b, flat), "incompatible flatten size"

    view = _lane_dense_view(b * flat)
    if view is not None:
        # Fully lane-dense re-view: no lane padding, no masked partial stores.
        flat_copy = _identity_copy_2d(x.reshape(view))
    else:
        flat_copy = _identity_copy_2d(x)

    # Metadata-only row-major reshape == torch .view on a contiguous tensor.
    return flat_copy.reshape(b, filters, size, size)


if __name__ == "__main__":
    # Module defaults: filters=1, size=28 -> flat dim = 784.
    filters, size = 1, 28
    flat = filters * size * size
    key = jax.random.PRNGKey(0)
    k1, k2 = jax.random.split(key)

    # Case 1: small module-default batch (falls back to the (B, flat) layout).
    # References are computed BEFORE the kernel call: the kernel aliases the
    # input HBM buffer, so the inputs must not be used afterwards.
    x_small = jax.random.normal(k1, (2, flat), dtype=jnp.float32)
    ref_small = jax.block_until_ready(jnp.reshape(x_small, (2, filters, size, size)))
    out_small = jax.block_until_ready(unflatten(x_small, filters=filters, size=size))

    # Case 2: batch where (B * flat) % 128 == 0 -> lane-dense re-view path.
    x_big = jax.random.normal(k2, (16, flat), dtype=jnp.float32)
    ref_big = jax.block_until_ready(jnp.reshape(x_big, (16, filters, size, size)))
    out_big = jax.block_until_ready(unflatten(x_big, filters=filters, size=size))

    assert out_small.shape == ref_small.shape and out_small.dtype == ref_small.dtype
    assert jnp.array_equal(out_small, ref_small)
    assert out_big.shape == ref_big.shape and out_big.dtype == ref_big.dtype
    assert jnp.array_equal(out_big, ref_big)
    print("KERNEL_OK")
</pallas_src>

<mosaic_0001>
module attributes {stable_mosaic.version = 11 : i64} {
  func.func @_copy_kernel(%arg0: i32, %arg1: memref<2x784xf32, #tpu.memory_space<vmem>>, %arg2: memref<2x784xf32, #tpu.memory_space<vmem>>) attributes {dimension_semantics = [#tpu.dimension_semantics<parallel>], iteration_bounds = array<i64: 1>, scalar_prefetch = 0 : i64, scratch_operands = 0 : i64, tpu.core_type = #tpu.core_type<tc>, window_params = [{transform_indices = @transform_0, window_bounds = array<i64: 2, 784>}, {transform_indices = @transform_1, window_bounds = array<i64: 2, 784>}]} {
    %c0 = arith.constant 0 : index
    %c0_0 = arith.constant 0 : index
    %0 = vector.load %arg1[%c0, %c0_0] : memref<2x784xf32, #tpu.memory_space<vmem>>, vector<2x784xf32>
    %c0_1 = arith.constant 0 : index
    %c0_2 = arith.constant 0 : index
    %1 = vector.load %arg2[%c0_1, %c0_2] : memref<2x784xf32, #tpu.memory_space<vmem>>, vector<2x784xf32>
    tpu.vector_store %arg2[%c0_1, %c0_2], %0 {strides = array<i32>} : memref<2x784xf32, #tpu.memory_space<vmem>>, vector<2x784xf32>,
    return
  }
  func.func @transform_0(%arg0: i32) -> (i32, i32) {
    %c0_i32 = arith.constant 0 : i32
    %c0_i32_0 = arith.constant 0 : i32
    return %arg0, %c0_i32 : i32, i32
  }
  func.func @transform_1(%arg0: i32) -> (i32, i32) {
    %c0_i32 = arith.constant 0 : i32
    %c0_i32_0 = arith.constant 0 : i32
    return %arg0, %c0_i32 : i32, i32
  }
}

</mosaic_0001>

<llo_original>
// kernel: tpu_custom_call.1
$region0: #{tpu_custom_call.1}
  #allocation0 [shape = 'u32[]', space=smem, size = 0x4, offset = 0x4, fixed_abs, tag = 'smem constant byte address 0x4 - core index']
  #allocation1 [shape = 'u32[144,128]{1,0:T(1,128)}', space=vmem, size = 0x12000, scoped, tag = 'internal scratch']
  %s0 = inlined_call_operand.hbm [shape: f32[2,784], index: 0, kind: input, shape index: {}, may-alias: {0,1}]
  %s1 = inlined_call_operand.hbm [shape: f32[2,784], index: 1, kind: output, shape index: {}, may-alias: {0,1}]
  %s2 = sld [smem:[#allocation0]]
  $region18: #{tpu_custom_call.1} parent=0
    _
  %s4 = ssub.s32 1, %s2
  %s5 = scalar_select 0, %s4, %s2
  $region1: #{tpu_custom_call.1} parent=0
    #allocation2 [shape = 'u8[7168]{0}', space=vmem, size = 0x1c00, scoped, tag = 'input window, operand 0, single buffered']
    #allocation3 [shape = 's32[1]{0}', space=sflag, size = 0x4, scoped, tag = 'scoped memory for tpu_custom_call.1']
    #allocation4 [shape = 's32[1]{0}', space=sflag, size = 0x4, scoped, tag = 'scoped memory for tpu_custom_call.1']
    #allocation5 [shape = 'u8[7168]{0}', space=vmem, size = 0x1c00, scoped, tag = 'output window, operand 0, single buffered']
    %6 = vsyncpa [#allocation3], 0
    %7 = vsyncpa [#allocation4], 0
    // Predicated region
    $region2: #{tpu_custom_call.1} parent=1 // pred_check
      _
    $region3: #{tpu_custom_call.1} parent=1 // pred_check_branch
      %9 = sbr.rel (0) target = $region5
    $region4: #{tpu_custom_call.1} parent=1 // pred_region
      %s11 = ssub.s32 224, 224
      %12 = vsyncadd [#allocation3], %s11
      %s14 = sshll.u32 [#allocation2], 4
      %s15 = int_to_ptr.vmem [resolvable:$true] %s14
      %17 = dma.hbm_to_vmem [thread:$0]  %s0, 224, %s15, [#allocation3]
    $region5: #{tpu_custom_call.1} parent=1 // pred_fallthru
      _
    // Predicated region
    $region6: #{tpu_custom_call.1} parent=1 // pred_check
      _
    $region7: #{tpu_custom_call.1} parent=1 // pred_check_branch
      %19 = sbr.rel (0) target = $region9
    $region8: #{tpu_custom_call.1} parent=1 // pred_region
      %20 = dma.done [#allocation3], 224
    $region9: #{tpu_custom_call.1} parent=1 // pred_fallthru
      _
    %v21 = vld [vmem:[#allocation2] sm:$0xff]
    %v22 = vld [vmem:[#allocation2 + $0x8] sm:$0x3f]
    %23 = vst [vmem:[#allocation5] sm:$0xff] %v21
    %vm24 = vcmask 1041408
    %vm25 = vcmask 1043458
    %vm26 = vmor %vm25, %vm24
    %vm27 = vcmask 128004
    %vm28 = vmor %vm27, %vm26
    %29 = vst.msk [vmem:[#allocation5 + $0x8] sm:$0x3f] %vm28, %v22
    // Predicated region
    $region10: #{tpu_custom_call.1} parent=1 // pred_check
      _
    $region11: #{tpu_custom_call.1} parent=1 // pred_check_branch
      %31 = sbr.rel (0) target = $region13
    $region12: #{tpu_custom_call.1} parent=1 // pred_region
      %s33 = ssub.s32 224, 224
      %34 = vsyncadd [#allocation4], %s33
      %s36 = sshll.u32 [#allocation5], 4
      %s37 = int_to_ptr.vmem [resolvable:$true] %s36
      %39 = dma.vmem_to_hbm [thread:$0]  %s37, 224, %s1, [#allocation4]
    $region13: #{tpu_custom_call.1} parent=1 // pred_fallthru
      _
    // Predicated region
    $region14: #{tpu_custom_call.1} parent=1 // pred_check
      _
    $region15: #{tpu_custom_call.1} parent=1 // pred_check_branch
      %41 = sbr.rel (0) target = $region17
    $region16: #{tpu_custom_call.1} parent=1 // pred_region
      %42 = dma.done [#allocation4], 224
    $region17: #{tpu_custom_call.1} parent=1 // pred_fallthru
      _
    %43 = vsyncpa [#allocation3], 1
    %44 = vsyncpa [#allocation4], 1

</llo_original>
